<compile_context>
chip_gen: v7x
topology: tpu7x:2x2x1
jax: 0.10.0
libtpu: 0.0.40
codegen_flags: <defaults>
</compile_context>

<pallas_src>
import jax
import jax.numpy as jnp
from jax import lax
from jax.experimental import pallas as pl
from jax.experimental.pallas import tpu as pltpu

EPS = 1e-5
LANE = 128


def _round_up(n, m):
    return (n + m - 1) // m * m


def reslinear_kernel(
    x_ref,              # (TILE_N, F)        input tile
    w1_ref, b1_ref,     # (F, H), (1, H)     Linear+BN1 folded
    w2_ref, b2_ref,     # (H, F), (1, F)     Linear+BN2 folded
    wf_ref, bf_ref,     # (F, O_pad), (1, O_pad)  fc Linear (O zero-padded to 128)
    alpha_ref,          # (1, 3) SMEM        PReLU slopes [a1, a2, a3]
    o_ref,              # (TILE_N, O_pad)
):
    a1 = alpha_ref[0, 0]
    a2 = alpha_ref[0, 1]
    a3 = alpha_ref[0, 2]

    x = x_ref[...]

    # linear[0..3]: Linear(F->H) (+folded BatchNorm1d) -> PReLU -> Dropout(eval)=id
    h = jnp.dot(x, w1_ref[...], preferred_element_type=jnp.float32) + b1_ref[...]
    h = jnp.where(h >= 0.0, h, a1 * h)

    # linear[4..5]: Linear(H->F) (+folded BatchNorm1d); residual add; self.prelu
    y = jnp.dot(h.astype(w2_ref.dtype), w2_ref[...],
                preferred_element_type=jnp.float32) + b2_ref[...]
    y = y + x.astype(jnp.float32)
    y = jnp.where(y >= 0.0, y, a2 * y)

    # fc: Linear(F->O) -> PReLU -> Dropout(eval)=id
    z = jnp.dot(y.astype(wf_ref.dtype), wf_ref[...],
                preferred_element_type=jnp.float32) + bf_ref[...]
    z = jnp.where(z >= 0.0, z, a3 * z)

    o_ref[...] = z.astype(o_ref.dtype)


def res_linear_forward(x, params, *, tile_n=512):
    """Fused ResLinear forward (eval mode). x: (N, F)."""
    N, F = x.shape
    H = params["w1"].shape[1]
    O = params["wf"].shape[1]
    out_dtype = x.dtype

    # ---- Fold eval-mode BatchNorm1d into the adjacent Linear (exact in eval) ----
    s1 = params["g1"] * lax.rsqrt(params["v1"] + EPS)                      # (1, H)
    w1 = (params["w1"].astype(jnp.float32) * s1).astype(x.dtype)           # (F, H)
    b1 = ((params["b1"] - params["m1"]) * s1 + params["beta1"]).astype(jnp.float32)

    s2 = params["g2"] * lax.rsqrt(params["v2"] + EPS)                      # (1, F)
    w2 = (params["w2"].astype(jnp.float32) * s2).astype(x.dtype)           # (H, F)
    b2 = ((params["b2"] - params["m2"]) * s2 + params["beta2"]).astype(jnp.float32)

    # ---- Lane-dense output: pad O up to a multiple of 128 (sliced off after) ----
    O_pad = _round_up(O, LANE)
    wf = jnp.pad(params["wf"].astype(jnp.float32),
                 ((0, 0), (0, O_pad - O))).astype(x.dtype)                 # (F, O_pad)
    bf = jnp.pad(params["bf"].astype(jnp.float32), ((0, 0), (0, O_pad - O)))

    # ---- All three PReLU slopes in one small SMEM operand ----
    alphas = jnp.stack([params["a1"].reshape(()),
                        params["a2"].reshape(()),
                        params["a3"].reshape(())]).reshape(1, 3).astype(jnp.float32)

    # ---- Batch tiling ----
    TILE_N = min(tile_n, _round_up(N, 8))
    N_pad = _round_up(N, TILE_N)
    x_p = jnp.pad(x, ((0, N_pad - N), (0, 0))) if N_pad != N else x
    n_tiles = N_pad // TILE_N

    # Explicit VMEM budget: double-buffered x/out tiles + resident weights +
    # headroom for the (TILE_N, H/F/O_pad) f32 intermediates. Clamped to stay
    # safely under v7x's 64 MiB physical VMEM.
    itm = jnp.dtype(x.dtype).itemsize
    vmem_est = (2 * TILE_N * (F * itm + O_pad * itm)
                + 2 * (F * H + H * F + F * O_pad) * itm
                + 2 * (H + F + O_pad) * 4
                + 4 * TILE_N * max(H, F, O_pad) * 4)
    vmem_limit = int(min(max(2 * vmem_est, 8 * 1024 * 1024), 48 * 1024 * 1024))

    smem = pltpu.MemorySpace.SMEM
    in_specs = [
        pl.BlockSpec((TILE_N, F), lambda i: (i, 0)),                # x tile
        pl.BlockSpec((F, H),      lambda i: (0, 0)),                # w1 (VMEM-resident)
        pl.BlockSpec((1, H),      lambda i: (0, 0)),                # b1
        pl.BlockSpec((H, F),      lambda i: (0, 0)),                # w2
        pl.BlockSpec((1, F),      lambda i: (0, 0)),                # b2
        pl.BlockSpec((F, O_pad),  lambda i: (0, 0)),                # wf
        pl.BlockSpec((1, O_pad),  lambda i: (0, 0)),                # bf
        pl.BlockSpec((1, 3),      lambda i: (0, 0), memory_space=smem),  # PReLU slopes
    ]
    out_specs = pl.BlockSpec((TILE_N, O_pad), lambda i: (i, 0))

    out = pl.pallas_call(
        reslinear_kernel,
        out_shape=jax.ShapeDtypeStruct((N_pad, O_pad), out_dtype),
        grid=(n_tiles,),
        in_specs=in_specs,
        out_specs=out_specs,
        compiler_params=pltpu.CompilerParams(
            dimension_semantics=("parallel",),
            vmem_limit_bytes=vmem_limit,
        ),
    )(x_p, w1, b1, w2, b2, wf, bf, alphas)

    return out[:N, :O]


def init_params(key, in_out_features, hidden_features, out_features):
    """Deterministic init mirroring the PyTorch module's parameter shapes."""
    F, H, O = in_out_features, hidden_features, out_features
    ks = jax.random.split(key, 14)

    def lin_init(kw, kb, fan_in, fan_out):
        bound = 1.0 / jnp.sqrt(fan_in)
        w = jax.random.uniform(kw, (fan_in, fan_out), jnp.float32, -bound, bound)
        b = jax.random.uniform(kb, (1, fan_out), jnp.float32, -bound, bound)
        return w, b

    w1, b1 = lin_init(ks[0], ks[1], F, H)
    w2, b2 = lin_init(ks[2], ks[3], H, F)
    wf, bf = lin_init(ks[4], ks[5], F, O)

    # Non-trivial BatchNorm eval-mode parameters so the fold is actually tested.
    params = dict(
        w1=w1, b1=b1,
        g1=jax.random.uniform(ks[6], (1, H), jnp.float32, 0.5, 1.5),
        beta1=0.1 * jax.random.normal(ks[7], (1, H), jnp.float32),
        m1=0.5 * jax.random.normal(ks[8], (1, H), jnp.float32),
        v1=jax.random.uniform(ks[9], (1, H), jnp.float32, 0.5, 1.5),
        a1=jnp.full((1, 1), 0.25, jnp.float32),
        w2=w2, b2=b2,
        g2=jax.random.uniform(ks[10], (1, F), jnp.float32, 0.5, 1.5),
        beta2=0.1 * jax.random.normal(ks[11], (1, F), jnp.float32),
        m2=0.5 * jax.random.normal(ks[12], (1, F), jnp.float32),
        v2=jax.random.uniform(ks[13], (1, F), jnp.float32, 0.5, 1.5),
        a2=jnp.full((1, 1), 0.25, jnp.float32),
        wf=wf, bf=bf,
        a3=jnp.full((1, 1), 0.25, jnp.float32),
    )
    return params


def reference_forward(x, p):
    """Pure-JAX reference (explicit eval-mode BN, no folding)."""
    def prelu(v, a):
        return jnp.where(v >= 0.0, v, a * v)

    h = x @ p["w1"] + p["b1"]
    h = (h - p["m1"]) * lax.rsqrt(p["v1"] + EPS) * p["g1"] + p["beta1"]
    h = prelu(h, p["a1"][0, 0])
    y = h @ p["w2"] + p["b2"]
    y = (y - p["m2"]) * lax.rsqrt(p["v2"] + EPS) * p["g2"] + p["beta2"]
    y = y + x
    y = prelu(y, p["a2"][0, 0])
    z = y @ p["wf"] + p["bf"]
    z = prelu(z, p["a3"][0, 0])
    return z


if __name__ == "__main__":
    # Small shapes consistent with the module: batch=16, in_out=32, hidden=64, out=16.
    N, F, H, O = 16, 32, 64, 16

    key = jax.random.PRNGKey(0)
    k_x, k_p = jax.random.split(key)
    x = jax.random.normal(k_x, (N, F), jnp.float32)
    params = init_params(k_p, F, H, O)

    # tile_n=8 -> grid=(2,) so the batch-gridded pipeline path is exercised.
    out = res_linear_forward(x, params, tile_n=8)
    out = jax.block_until_ready(out)

    ref = reference_forward(x, params)
    assert out.shape == (N, O)
    assert jnp.allclose(out, ref, atol=1e-4, rtol=1e-4), "mismatch vs reference"

    print("KERNEL_OK")
</pallas_src>

<mosaic_0001>
module attributes {stable_mosaic.version = 11 : i64} {
  func.func @reslinear_kernel(%arg0: i32, %arg1: memref<8x32xf32, #tpu.memory_space<vmem>>, %arg2: memref<32x64xf32, #tpu.memory_space<vmem>>, %arg3: memref<1x64xf32, #tpu.memory_space<vmem>>, %arg4: memref<64x32xf32, #tpu.memory_space<vmem>>, %arg5: memref<1x32xf32, #tpu.memory_space<vmem>>, %arg6: memref<32x128xf32, #tpu.memory_space<vmem>>, %arg7: memref<1x128xf32, #tpu.memory_space<vmem>>, %arg8: memref<1x3xf32, #tpu.memory_space<smem>>, %arg9: memref<8x128xf32, #tpu.memory_space<vmem>>) attributes {dimension_semantics = [#tpu.dimension_semantics<parallel>], iteration_bounds = array<i64: 2>, scalar_prefetch = 0 : i64, scratch_operands = 0 : i64, tpu.core_type = #tpu.core_type<tc>, window_params = [{transform_indices = @transform_0, window_bounds = array<i64: 8, 32>}, {pipeline_mode = #tpu.pipeline_mode<synchronous>, transform_indices = @transform_1, window_bounds = array<i64: 32, 64>}, {pipeline_mode = #tpu.pipeline_mode<synchronous>, transform_indices = @transform_2, window_bounds = array<i64: 1, 64>}, {pipeline_mode = #tpu.pipeline_mode<synchronous>, transform_indices = @transform_3, window_bounds = array<i64: 64, 32>}, {pipeline_mode = #tpu.pipeline_mode<synchronous>, transform_indices = @transform_4, window_bounds = array<i64: 1, 32>}, {pipeline_mode = #tpu.pipeline_mode<synchronous>, transform_indices = @transform_5, window_bounds = array<i64: 32, 128>}, {pipeline_mode = #tpu.pipeline_mode<synchronous>, transform_indices = @transform_6, window_bounds = array<i64: 1, 128>}, {transform_indices = @transform_7, window_bounds = array<i64: 1, 3>}, {transform_indices = @transform_8, window_bounds = array<i64: 8, 128>}]} {
    %c0 = arith.constant 0 : index
    %c0_0 = arith.constant 0 : index
    %0 = memref.load %arg8[%c0, %c0_0] : memref<1x3xf32, #tpu.memory_space<smem>>
    %c0_1 = arith.constant 0 : index
    %c1 = arith.constant 1 : index
    %1 = memref.load %arg8[%c0_1, %c1] : memref<1x3xf32, #tpu.memory_space<smem>>
    %c0_2 = arith.constant 0 : index
    %c2 = arith.constant 2 : index
    %2 = memref.load %arg8[%c0_2, %c2] : memref<1x3xf32, #tpu.memory_space<smem>>
    %c0_3 = arith.constant 0 : index
    %c0_4 = arith.constant 0 : index
    %3 = vector.load %arg1[%c0_3, %c0_4] : memref<8x32xf32, #tpu.memory_space<vmem>>, vector<8x32xf32>
    %c0_5 = arith.constant 0 : index
    %c0_6 = arith.constant 0 : index
    %4 = vector.load %arg2[%c0_5, %c0_6] : memref<32x64xf32, #tpu.memory_space<vmem>>, vector<32x64xf32>
    %cst = arith.constant dense<0.000000e+00> : vector<8x64xf32>
    %5 = tpu.matmul %3, %4, %cst {dimension_numbers = #tpu.dot_dimension_numbers<[1], [0], [0], [1], [0, 0, 1, 1], [], []>} : vector<8x32xf32>, vector<32x64xf32>, vector<8x64xf32> -> vector<8x64xf32>
    %c0_7 = arith.constant 0 : index
    %c0_8 = arith.constant 0 : index
    %6 = vector.load %arg3[%c0_7, %c0_8] : memref<1x64xf32, #tpu.memory_space<vmem>>, vector<1x64xf32>
    %7 = vector.broadcast %6 : vector<1x64xf32> to vector<8x64xf32>
    %8 = arith.addf %5, %7 : vector<8x64xf32>
    %cst_9 = arith.constant 0.000000e+00 : f32
    %9 = vector.broadcast %cst_9 : f32 to vector<8x64xf32>
    %10 = arith.cmpf oge, %8, %9 : vector<8x64xf32>
    %11 = vector.broadcast %0 : f32 to vector<8x64xf32>
    %12 = arith.mulf %11, %8 : vector<8x64xf32>
    %13 = arith.select %10, %8, %12 : vector<8x64xi1>, vector<8x64xf32>
    %c0_10 = arith.constant 0 : index
    %c0_11 = arith.constant 0 : index
    %14 = vector.load %arg4[%c0_10, %c0_11] : memref<64x32xf32, #tpu.memory_space<vmem>>, vector<64x32xf32>
    %cst_12 = arith.constant dense<0.000000e+00> : vector<8x32xf32>
    %15 = tpu.matmul %13, %14, %cst_12 {dimension_numbers = #tpu.dot_dimension_numbers<[1], [0], [0], [1], [0, 0, 1, 1], [], []>} : vector<8x64xf32>, vector<64x32xf32>, vector<8x32xf32> -> vector<8x32xf32>
    %c0_13 = arith.constant 0 : index
    %c0_14 = arith.constant 0 : index
    %16 = vector.load %arg5[%c0_13, %c0_14] : memref<1x32xf32, #tpu.memory_space<vmem>>, vector<1x32xf32>
    %17 = vector.broadcast %16 : vector<1x32xf32> to vector<8x32xf32>
    %18 = arith.addf %15, %17 : vector<8x32xf32>
    %19 = arith.addf %18, %3 : vector<8x32xf32>
    %cst_15 = arith.constant 0.000000e+00 : f32
    %20 = vector.broadcast %cst_15 : f32 to vector<8x32xf32>
    %21 = arith.cmpf oge, %19, %20 : vector<8x32xf32>
    %22 = vector.broadcast %1 : f32 to vector<8x32xf32>
    %23 = arith.mulf %22, %19 : vector<8x32xf32>
    %24 = arith.select %21, %19, %23 : vector<8x32xi1>, vector<8x32xf32>
    %c0_16 = arith.constant 0 : index
    %c0_17 = arith.constant 0 : index
    %25 = vector.load %arg6[%c0_16, %c0_17] : memref<32x128xf32, #tpu.memory_space<vmem>>, vector<32x128xf32>
    %cst_18 = arith.constant dense<0.000000e+00> : vector<8x128xf32>
    %26 = tpu.matmul %24, %25, %cst_18 {dimension_numbers = #tpu.dot_dimension_numbers<[1], [0], [0], [1], [0, 0, 1, 1], [], []>} : vector<8x32xf32>, vector<32x128xf32>, vector<8x128xf32> -> vector<8x128xf32>
    %c0_19 = arith.constant 0 : index
    %c0_20 = arith.constant 0 : index
    %27 = vector.load %arg7[%c0_19, %c0_20] : memref<1x128xf32, #tpu.memory_space<vmem>>, vector<1x128xf32>
    %28 = vector.broadcast %27 : vector<1x128xf32> to vector<8x128xf32>
    %29 = arith.addf %26, %28 : vector<8x128xf32>
    %cst_21 = arith.constant 0.000000e+00 : f32
    %30 = vector.broadcast %cst_21 : f32 to vector<8x128xf32>
    %31 = arith.cmpf oge, %29, %30 : vector<8x128xf32>
    %32 = vector.broadcast %2 : f32 to vector<8x128xf32>
    %33 = arith.mulf %32, %29 : vector<8x128xf32>
    %34 = arith.select %31, %29, %33 : vector<8x128xi1>, vector<8x128xf32>
    %c0_22 = arith.constant 0 : index
    %c0_23 = arith.constant 0 : index
    %35 = vector.load %arg9[%c0_22, %c0_23] : memref<8x128xf32, #tpu.memory_space<vmem>>, vector<8x128xf32>
    tpu.vector_store %arg9[%c0_22, %c0_23], %34 {strides = array<i32>} : memref<8x128xf32, #tpu.memory_space<vmem>>, vector<8x128xf32>,
    return
  }
  func.func @transform_0(%arg0: i32) -> (i32, i32) {
    %c0_i32 = arith.constant 0 : i32
    %c0_i32_0 = arith.constant 0 : i32
    return %arg0, %c0_i32 : i32, i32
  }
  func.func @transform_1(%arg0: i32) -> (i32, i32) {
    %c0_i32 = arith.constant 0 : i32
    %c0_i32_0 = arith.constant 0 : i32
    %c0_i32_1 = arith.constant 0 : i32
    return %c0_i32, %c0_i32_0 : i32, i32
  }
  func.func @transform_2(%arg0: i32) -> (i32, i32) {
    %c0_i32 = arith.constant 0 : i32
    %c0_i32_0 = arith.constant 0 : i32
    %c0_i32_1 = arith.constant 0 : i32
    return %c0_i32, %c0_i32_0 : i32, i32
  }
  func.func @transform_3(%arg0: i32) -> (i32, i32) {
    %c0_i32 = arith.constant 0 : i32
    %c0_i32_0 = arith.constant 0 : i32
    %c0_i32_1 = arith.constant 0 : i32
    return %c0_i32, %c0_i32_0 : i32, i32
  }
  func.func @transform_4(%arg0: i32) -> (i32, i32) {
    %c0_i32 = arith.constant 0 : i32
    %c0_i32_0 = arith.constant 0 : i32
    %c0_i32_1 = arith.constant 0 : i32
    return %c0_i32, %c0_i32_0 : i32, i32
  }
  func.func @transform_5(%arg0: i32) -> (i32, i32) {
    %c0_i32 = arith.constant 0 : i32
    %c0_i32_0 = arith.constant 0 : i32
    %c0_i32_1 = arith.constant 0 : i32
    return %c0_i32, %c0_i32_0 : i32, i32
  }
  func.func @transform_6(%arg0: i32) -> (i32, i32) {
    %c0_i32 = arith.constant 0 : i32
    %c0_i32_0 = arith.constant 0 : i32
    %c0_i32_1 = arith.constant 0 : i32
    return %c0_i32, %c0_i32_0 : i32, i32
  }
  func.func @transform_7(%arg0: i32) -> (i32, i32) {
    %c0_i32 = arith.constant 0 : i32
    %c0_i32_0 = arith.constant 0 : i32
    %c0_i32_1 = arith.constant 0 : i32
    return %c0_i32, %c0_i32_0 : i32, i32
  }
  func.func @transform_8(%arg0: i32) -> (i32, i32) {
    %c0_i32 = arith.constant 0 : i32
    %c0_i32_0 = arith.constant 0 : i32
    return %arg0, %c0_i32 : i32, i32
  }
}

</mosaic_0001>

<llo_original>
// kernel: tpu_custom_call.1
$region0: #{tpu_custom_call.1}
  #allocation0 [shape = 'u32[]', space=smem, size = 0x4, offset = 0x4, fixed_abs, tag = 'smem constant byte address 0x4 - core index']
  #allocation1 [shape = 'u32[144,128]{1,0:T(1,128)}', space=vmem, size = 0x12000, scoped, tag = 'internal scratch']
  %s0 = inlined_call_operand.vmem [shape: f32[16,32], index: 0, kind: input, shape index: {}]
  %s1 = inlined_call_operand.vmem [shape: f32[32,64], index: 1, kind: input, shape index: {}]
  %s2 = inlined_call_operand.vmem [shape: f32[1,64], index: 2, kind: input, shape index: {}]
  %s3 = inlined_call_operand.vmem [shape: f32[64,32], index: 3, kind: input, shape index: {}]
  %s4 = inlined_call_operand.vmem [shape: f32[1,32], index: 4, kind: input, shape index: {}]
  %s5 = inlined_call_operand.vmem [shape: f32[32,128], index: 5, kind: input, shape index: {}]
  %s6 = inlined_call_operand.vmem [shape: f32[1,128], index: 6, kind: input, shape index: {}]
  %s7 = inlined_call_operand.vmem [shape: f32[1,3], index: 7, kind: input, shape index: {}]
  %s8 = inlined_call_operand.hbm [shape: f32[16,128], index: 8, kind: output, shape index: {}]
  %s9 = sld [smem:[#allocation0]]
  $region69: #{tpu_custom_call.1} parent=0
    _
  %s11 = ssub.s32 1, %s9
  %s12 = scalar_select 0, %s11, %s9
  $region1: #{tpu_custom_call.1} parent=0
    #allocation2 [shape = 'u8[512]{0}', space=smem, size = 0x200, scoped, tag = 'input window, operand 7, single buffered']
    #allocation3 [shape = 's32[2]{0}', space=sflag, size = 0x8, scoped, tag = 'scoped memory for tpu_custom_call.1']
    #allocation4 [shape = 's32[2]{0}', space=sflag, size = 0x8, scoped, tag = 'scoped memory for tpu_custom_call.1']
    #allocation5 [shape = 'u8[8192]{0}', space=vmem, size = 0x2000, scoped, tag = 'output window, operand 0']
    %13 = vsyncpa [#allocation4], 0
    %14 = vsyncpa [#allocation3], 0
    %s15 = scalar_lea.sflag [#allocation3], 1
    %16 = vsyncpa %s15, 0
    loop: start=0, step=1, limit=4
    $region2: #{tpu_custom_call.1} parent=1 // loop_pre_header
      _
    $region3: #{tpu_custom_call.1} parent=1 // loop_header
      %s18 = sphi 0, %s22
      %p19 = scmp.ge.s32.totalorder %s18, 4
      %s28 = sphi 0, %s30
      %s31 = sphi 0, %s28
      %s32 = sphi 0, %s31
      %s48 = sphi 0, %s32
      %s52 = sphi 0, %s52
      %s54 = sphi 0, %s52
      %s55 = sphi 0, %s54
      %s69 = sphi 0, %s55
      %s73 = sphi 0, %s73
      %s75 = sphi 0, %s73
      %s76 = sphi 0, %s75
      %s90 = sphi 0, %s76
      %s94 = sphi 0, %s94
      %s96 = sphi 0, %s94
      %s97 = sphi 0, %s96
      %s111 = sphi 0, %s97
      %s115 = sphi 0, %s115
      %s117 = sphi 0, %s115
      %s118 = sphi 0, %s117
      %s132 = sphi 0, %s118
      %s136 = sphi 0, %s136
      %s138 = sphi 0, %s136
      %s139 = sphi 0, %s138
      %s153 = sphi 0, %s139
      %s157 = sphi 0, %s157
      %s159 = sphi 0, %s157
      %s160 = sphi 0, %s159
      %s174 = sphi 0, %s160
      %s178 = sphi 0, %s178
      %s180 = sphi 0, %s178
      %s181 = sphi 0, %s180
      %s195 = sphi 0, %s181
      %s201 = sphi 0, %s203
      %s204 = sphi 0, %s201
      %s205 = sphi 0, %s204
      %s221 = sphi 0, %s205
    $region4: #{tpu_custom_call.1} parent=1 // loop_header_branch
      %21 = sbr.rel (%p19) target = $region8
    $region5: #{tpu_custom_call.1} parent=1 // loop_body
      %s23 = ssub.s32 %s18, 1
      %s24 = ssub.s32 %s18, 2
      %s25 = sadd.s32 %s18, 1
      %s26 = ssub.s32 %s18, %s25
      %p27 = scmp.eq.s32.totalorder %s26, 0
      %s29 = sadd.s32 %s28, 1
      %s30 = scalar_select %p27, %s28, %s29
      %p33 = pneg %p27
      %p34 = scmp.eq.s32.totalorder %s18, 1
      %p35 = por %p33, %p34
      %p36 = scmp.ne.s32.totalorder %s28, %s31
      %p37 = scmp.eq.s32.totalorder %s18, 0
      %p38 = por %p36, %p37
      %p39 = scmp.ne.s32.totalorder %s28, %s31
      %p40 = scmp.eq.s32.totalorder %s23, 1
      %p41 = por %p39, %p40
      %p42 = scmp.ne.s32.totalorder %s31, %s32
      %p43 = scmp.eq.s32.totalorder %s23, 0
      %p44 = por %p42, %p43
      %p45 = scmp.ne.s32.totalorder %s31, %s32
      %p46 = scmp.eq.s32.totalorder %s24, 1
      %p47 = por %p45, %p46
      %p49 = scmp.ne.s32.totalorder %s32, %s48
      %p50 = scmp.eq.s32.totalorder %s24, 0
      %p51 = por %p49, %p50
      %s53 = sadd.s32 %s52, 1
      %p56 = scmp.eq.s32.totalorder %s18, 1
      %p57 = scmp.ne.s32.totalorder %s52, %s54
      %p58 = scmp.eq.s32.totalorder %s18, 0
      %p59 = por %p57, %p58
      %p60 = scmp.ne.s32.totalorder %s52, %s54
      %p61 = scmp.eq.s32.totalorder %s23, 1
      %p62 = por %p60, %p61
      %p63 = scmp.ne.s32.totalorder %s54, %s55
      %p64 = scmp.eq.s32.totalorder %s23, 0
      %p65 = por %p63, %p64
      %p66 = scmp.ne.s32.totalorder %s54, %s55
      %p67 = scmp.eq.s32.totalorder %s24, 1
      %p68 = por %p66, %p67
      %p70 = scmp.ne.s32.totalorder %s55, %s69
      %p71 = scmp.eq.s32.totalorder %s24, 0
      %p72 = por %p70, %p71
      %s74 = sadd.s32 %s73, 1
      %p77 = scmp.eq.s32.totalorder %s18, 1
      %p78 = scmp.ne.s32.totalorder %s73, %s75
      %p79 = scmp.eq.s32.totalorder %s18, 0
      %p80 = por %p78, %p79
      %p81 = scmp.ne.s32.totalorder %s73, %s75
      %p82 = scmp.eq.s32.totalorder %s23, 1
      %p83 = por %p81, %p82
      %p84 = scmp.ne.s32.totalorder %s75, %s76
      %p85 = scmp.eq.s32.totalorder %s23, 0
      %p86 = por %p84, %p85
      %p87 = scmp.ne.s32.totalorder %s75, %s76
      %p88 = scmp.eq.s32.totalorder %s24, 1
      %p89 = por %p87, %p88
      %p91 = scmp.ne.s32.totalorder %s76, %s90
      %p92 = scmp.eq.s32.totalorder %s24, 0
      %p93 = por %p91, %p92
      %s95 = sadd.s32 %s94, 1
      %p98 = scmp.eq.s32.totalorder %s18, 1
      %p99 = scmp.ne.s32.totalorder %s94, %s96
      %p100 = scmp.eq.s32.totalorder %s18, 0
      %p101 = por %p99, %p100
      %p102 = scmp.ne.s32.totalorder %s94, %s96
      %p103 = scmp.eq.s32.totalorder %s23, 1
      %p104 = por %p102, %p103
      %p105 = scmp.ne.s32.totalorder %s96, %s97
      %p106 = scmp.eq.s32.totalorder %s23, 0
      %p107 = por %p105, %p106
      %p108 = scmp.ne.s32.totalorder %s96, %s97
      %p109 = scmp.eq.s32.totalorder %s24, 1
      %p110 = por %p108, %p109
      %p112 = scmp.ne.s32.totalorder %s97, %s111
      %p113 = scmp.eq.s32.totalorder %s24, 0
      %p114 = por %p112, %p113
      %s116 = sadd.s32 %s115, 1
      %p119 = scmp.eq.s32.totalorder %s18, 1
      %p120 = scmp.ne.s32.totalorder %s115, %s117
      %p121 = scmp.eq.s32.totalorder %s18, 0
      %p122 = por %p120, %p121
      %p123 = scmp.ne.s32.totalorder %s115, %s117
      %p124 = scmp.eq.s32.totalorder %s23, 1
      %p125 = por %p123, %p124
      %p126 = scmp.ne.s32.totalorder %s117, %s118
      %p127 = scmp.eq.s32.totalorder %s23, 0
      %p128 = por %p126, %p127
      %p129 = scmp.ne.s32.totalorder %s117, %s118
      %p130 = scmp.eq.s32.totalorder %s24, 1
      %p131 = por %p129, %p130
      %p133 = scmp.ne.s32.totalorder %s118, %s132
      %p134 = scmp.eq.s32.totalorder %s24, 0
      %p135 = por %p133, %p134
      %s137 = sadd.s32 %s136, 1
      %p140 = scmp.eq.s32.totalorder %s18, 1
      %p141 = scmp.ne.s32.totalorder %s136, %s138
      %p142 = scmp.eq.s32.totalorder %s18, 0
      %p143 = por %p141, %p142
      %p144 = scmp.ne.s32.totalorder %s136, %s138
      %p145 = scmp.eq.s32.totalorder %s23, 1
      %p146 = por %p144, %p145
      %p147 = scmp.ne.s32.totalorder %s138, %s139
      %p148 = scmp.eq.s32.totalorder %s23, 0
      %p149 = por %p147, %p148
      %p150 = scmp.ne.s32.totalorder %s138, %s139
      %p151 = scmp.eq.s32.totalorder %s24, 1
      %p152 = por %p150, %p151
      %p154 = scmp.ne.s32.totalorder %s139, %s153
      %p155 = scmp.eq.s32.totalorder %s24, 0
      %p156 = por %p154, %p155
      %s158 = sadd.s32 %s157, 1
      %p161 = scmp.eq.s32.totalorder %s18, 1
      %p162 = scmp.ne.s32.totalorder %s157, %s159
      %p163 = scmp.eq.s32.totalorder %s18, 0
      %p164 = por %p162, %p163
      %p165 = scmp.ne.s32.totalorder %s157, %s159
      %p166 = scmp.eq.s32.totalorder %s23, 1
      %p167 = por %p165, %p166
      %p168 = scmp.ne.s32.totalorder %s159, %s160
      %p169 = scmp.eq.s32.totalorder %s23, 0
      %p170 = por %p168, %p169
      %p171 = scmp.ne.s32.totalorder %s159, %s160
      %p172 = scmp.eq.s32.totalorder %s24, 1
      %p173 = por %p171, %p172
      %p175 = scmp.ne.s32.totalorder %s160, %s174
      %p176 = scmp.eq.s32.totalorder %s24, 0
      %p177 = por %p175, %p176
      %s179 = sadd.s32 %s178, 1
      %p182 = scmp.eq.s32.totalorder %s18, 1
      %p183 = scmp.ne.s32.totalorder %s178, %s180
      %p184 = scmp.eq.s32.totalorder %s18, 0
      %p185 = por %p183, %p184
      %p186 = scmp.ne.s32.totalorder %s178, %s180
      %p187 = scmp.eq.s32.totalorder %s23, 1
      %p188 = por %p186, %p187
      %p189 = scmp.ne.s32.totalorder %s180, %s181
      %p190 = scmp.eq.s32.totalorder %s23, 0
      %p191 = por %p189, %p190
      %p192 = scmp.ne.s32.totalorder %s180, %s181
      %p193 = scmp.eq.s32.totalorder %s24, 1
      %p194 = por %p192, %p193
      %p196 = scmp.ne.s32.totalorder %s181, %s195
      %p197 = scmp.eq.s32.totalorder %s24, 0
      %p198 = por %p196, %p197
      %s199 = ssub.s32 %s18, %s25
      %p200 = scmp.eq.s32.totalorder %s199, 0
      %s202 = sadd.s32 %s201, 1
      %s203 = scalar_select %p200, %s201, %s202
      %p206 = pneg %p200
      %p207 = scmp.eq.s32.totalorder %s18, 1
      %p208 = por %p206, %p207
      %p209 = scmp.ne.s32.totalorder %s201, %s204
      %p210 = scmp.eq.s32.totalorder %s18, 0
      %p211 = por %p209, %p210
      %p212 = scmp.ne.s32.totalorder %s201, %s204
      %p213 = scmp.eq.s32.totalorder %s23, 1
      %p214 = por %p212, %p213
      %p215 = scmp.ne.s32.totalorder %s204, %s205
      %p216 = scmp.eq.s32.totalorder %s23, 0
      %p217 = por %p215, %p216
      %p218 = scmp.ne.s32.totalorder %s204, %s205
      %p219 = scmp.eq.s32.totalorder %s24, 1
      %p220 = por %p218, %p219
      %p222 = scmp.ne.s32.totalorder %s205, %s221
      %p223 = scmp.eq.s32.totalorder %s24, 0
      %p224 = por %p222, %p223
      %p225 = scmp.le.s32.totalorder 1, %s18
      %p226 = scmp.lt.s32.totalorder %s18, 3
      %p227 = pnand %p225, %p226
      %p228 = pneg %p227
      // Predicated region
      $region9: #{tpu_custom_call.1} parent=5 // pred_check
        _
      $region10: #{tpu_custom_call.1} parent=5 // pred_check_branch
        %230 = sbr.rel (%p227) target = $region12
      $region11: #{tpu_custom_call.1} parent=5 // pred_region
        %s231 = ssub.s32 %s18, 1
        // Predicated region
        $region13: #{tpu_custom_call.1} parent=11 // pred_check
          %p232 = pneg %p65
        $region14: #{tpu_custom_call.1} parent=11 // pred_check_branch
          %234 = sbr.rel (%p232) target = $region16
        $region15: #{tpu_custom_call.1} parent=11 // pred_region
          _
        $region16: #{tpu_custom_call.1} parent=11 // pred_fallthru
          _
        // Predicated region
        $region17: #{tpu_custom_call.1} parent=11 // pred_check
          %p235 = pneg %p86
        $region18: #{tpu_custom_call.1} parent=11 // pred_check_branch
          %237 = sbr.rel (%p235) target = $region20
        $region19: #{tpu_custom_call.1} parent=11 // pred_region
          _
        $region20: #{tpu_custom_call.1} parent=11 // pred_fallthru
          _
        // Predicated region
        $region21: #{tpu_custom_call.1} parent=11 // pred_check
          %p238 = pneg %p107
        $region22: #{tpu_custom_call.1} parent=11 // pred_check_branch
          %240 = sbr.rel (%p238) target = $region24
        $region23: #{tpu_custom_call.1} parent=11 // pred_region
          _
        $region24: #{tpu_custom_call.1} parent=11 // pred_fallthru
          _
        // Predicated region
        $region25: #{tpu_custom_call.1} parent=11 // pred_check
          %p241 = pneg %p128
        $region26: #{tpu_custom_call.1} parent=11 // pred_check_branch
          %243 = sbr.rel (%p241) target = $region28
        $region27: #{tpu_custom_call.1} parent=11 // pred_region
          _
        $region28: #{tpu_custom_call.1} parent=11 // pred_fallthru
          _
        // Predicated region
        $region29: #{tpu_custom_call.1} parent=11 // pred_check
          %p244 = pneg %p149
        $region30: #{tpu_custom_call.1} parent=11 // pred_check_branch
          %246 = sbr.rel (%p244) target = $region32
        $region31: #{tpu_custom_call.1} parent=11 // pred_region
          _
        $region32: #{tpu_custom_call.1} parent=11 // pred_fallthru
          _
        // Predicated region
        $region33: #{tpu_custom_call.1} parent=11 // pred_check
          %p247 = pneg %p170
        $region34: #{tpu_custom_call.1} parent=11 // pred_check_branch
          %249 = sbr.rel (%p247) target = $region36
        $region35: #{tpu_custom_call.1} parent=11 // pred_region
          _
        $region36: #{tpu_custom_call.1} parent=11 // pred_fallthru
          _
        // Predicated region
        $region37: #{tpu_custom_call.1} parent=11 // pred_check
          %p250 = pneg %p191
        $region38: #{tpu_custom_call.1} parent=11 // pred_check_branch
          %252 = sbr.rel (%p250) target = $region40
        $region39: #{tpu_custom_call.1} parent=11 // pred_region
          %s254 = ssub.s32 16, 16
          %255 = vsyncadd [#allocation4], %s254
          %s257 = sshll.u32 %s7, 4
          %s258 = int_to_ptr.vmem [resolvable:$true] %s257
          %260 = dma.vmem_to_smem %s258, 16, [#allocation2], [#allocation4]
        $region40: #{tpu_custom_call.1} parent=11 // pred_fallthru
          _
      $region12: #{tpu_custom_call.1} parent=5 // pred_fallthru
        _
      %p261 = scmp.lt.s32.totalorder %s18, 2
      // Predicated region
      $region41: #{tpu_custom_call.1} parent=5 // pred_check
        %p262 = pneg %p261
      $region42: #{tpu_custom_call.1} parent=5 // pred_check_branch
        %264 = sbr.rel (%p262) target = $region44
      $region43: #{tpu_custom_call.1} parent=5 // pred_region
        // Predicated region
        $region45: #{tpu_custom_call.1} parent=43 // pred_check
          %p265 = pneg %p38
        $region46: #{tpu_custom_call.1} parent=43 // pred_check_branch
          %267 = sbr.rel (%p265) target = $region48
        $region47: #{tpu_custom_call.1} parent=43 // pred_region
          %p268 = scmp.lt.s32.totalorder %s18, 1
          %s269 = scalar_select %p268, %s18, 1
          %s270 = smul.addr %s269, 8
          %s271 = scalar_lea.vmem %s0, %s270
        $region48: #{tpu_custom_call.1} parent=43 // pred_fallthru
          _
      $region44: #{tpu_custom_call.1} parent=5 // pred_fallthru
        _
      %p272 = scmp.le.s32.totalorder 1, %s18
      %p273 = scmp.lt.s32.totalorder %s18, 3
      %p274 = pnand %p272, %p273
      %p275 = pneg %p274
      // Predicated region
      $region49: #{tpu_custom_call.1} parent=5 // pred_check
        _
      $region50: #{tpu_custom_call.1} parent=5 // pred_check_branch
        %277 = sbr.rel (%p274) target = $region52
      $region51: #{tpu_custom_call.1} parent=5 // pred_region
        %s278 = ssub.s32 %s18, 1
        // Predicated region
        $region53: #{tpu_custom_call.1} parent=51 // pred_check
          %p279 = pneg %p191
        $region54: #{tpu_custom_call.1} parent=51 // pred_check_branch
          %281 = sbr.rel (%p279) target = $region56
        $region55: #{tpu_custom_call.1} parent=51 // pred_region
          %282 = dma.done [#allocation4], 16
        $region56: #{tpu_custom_call.1} parent=51 // pred_fallthru
          _
        %283 = sfence
        %p284 = scmp.lt.s32.totalorder %s23, 1
        %s285 = scalar_select %p284, %s23, 1
        %s286 = smul.addr %s285, 8
        %s287 = scalar_lea.vmem %s0, %s286
        %p288 = pneg %p44
        %p289 = pneg %p41
        %p290 = pneg %p65
        %p291 = pneg %p62
        %p292 = pneg %p86
        %p293 = pneg %p83
        %p294 = pneg %p107
        %p295 = pneg %p104
        %p296 = pneg %p128
        %p297 = pneg %p125
        %p298 = pneg %p149
        %p299 = pneg %p146
        %p300 = pneg %p170
        %p301 = pneg %p167
        %p302 = pneg %p191
        %p303 = pneg %p188
        %p304 = pneg %p217
        %p305 = pneg %p214
        %s306 = sand.u32 %s204, 1
        %s307 = scalar_lea.sflag [#allocation3], %s306
        %s308 = sand.u32 %s204, 1
        %s309 = smul.addr %s308, 8
        %s310 = scalar_lea.vmem [#allocation5], %s309
        %p311 = scmp.lt.s32.totalorder %s23, 1
        %s312 = scalar_select %p311, %s23, 1
        %s313 = smul.addr %s312, 8
        %s314 = scalar_lea.vmem %s0, %s313
        %s315 = sld [smem:[#allocation2]]
        %s316 = sld [smem:[#allocation2 + $0x1]]
        %s317 = sld [smem:[#allocation2 + $0x2]]
        %v318 = vld [vmem:[%s314] sm:$0xff]
        %v319 = vld [vmem:[%s1] sm:$0xff]
        %v320 = vld [vmem:[%s1 + $0x8] sm:$0xff]
        %v321 = vld [vmem:[%s1 + $0x10] sm:$0xff]
        %v322 = vld [vmem:[%s1 + $0x18] sm:$0xff]
        %v323 = vld [vmem:[%s2] sm:$0x1]
        %v325 = vlaneseq
        %v326 = vshrl.u32 %v325, 7
        %v327 = vsub.s32 0, %v326
        %v328 = vrot.slane %v323, %v327
        %vm330 = vcmask 261120
        %v332 = vsel %vm330, %v318, 0
        %334 = vmatprep.subr.mxu0 0.0
        %335 = vmatpush1.msra.mxu0 %v319
        %336 = vmatprep.subr.mxu0 0.0
        %337 = vmatpush1.msra.mxu0 %v320
        %338 = vmatprep.subr.mxu0 0.0
        %339 = vmatpush1.msra.mxu0 %v321
        %340 = vmatprep.subr.mxu0 0.0
        %341 = vmatpush1.msra.mxu0 %v322
        %342 = vmatprep.subr.mxu0 0.0
        %343 = vmatpush1.msra.mxu0 0.0
        %344 = vmatprep.subr.mxu0 0.0
        %345 = vmatpush1.msra.mxu0 0.0
        %346 = vmatprep.subr.mxu0 0.0
        %347 = vmatpush1.msra.mxu0 0.0
        %348 = vmatprep.subr.mxu0 0.0
        %349 = vmatpush1.msra.mxu0 0.0
        %350 = vmatprep.subr.mxu0 0.0
        %351 = vmatpush1.msra.mxu0 0.0
        %352 = vmatprep.subr.mxu0 0.0
        %353 = vmatpush1.msra.mxu0 0.0
        %354 = vmatprep.subr.mxu0 0.0
        %355 = vmatpush1.msra.mxu0 0.0
        %356 = vmatprep.subr.mxu0 0.0
        %357 = vmatpush1.msra.mxu0 0.0
        %358 = vmatprep.subr.mxu0 0.0
        %359 = vmatpush1.msra.mxu0 0.0
        %360 = vmatprep.subr.mxu0 0.0
        %361 = vmatpush1.msra.mxu0 0.0
        %362 = vmatprep.subr.mxu0 0.0
        %363 = vmatpush1.msra.mxu0 0.0
        %364 = vmatprep.subr.mxu0 0.0
        %365 = vmatpush1.msra.mxu0 0.0
        %366 = vmatprep.subr.mxu0 0.0
        %367 = vmatpush1.msra.mxu0 0.0
        %368 = vmatprep.subr.mxu0 0.0
        %369 = vmatpush1.msra.mxu0 0.0
        %370 = vmatprep.subr.mxu0 0.0
        %371 = vmatpush1.msra.mxu0 0.0
        %372 = vmatprep.subr.mxu0 0.0
        %373 = vmatpush1.msra.mxu0 0.0
        %374 = vmatprep.subr.mxu0 0.0
        %375 = vmatpush1.msra.mxu0 0.0
        %376 = vmatprep.subr.mxu0 0.0
        %377 = vmatpush1.msra.mxu0 0.0
        %378 = vmatprep.subr.mxu0 0.0
        %379 = vmatpush1.msra.mxu0 0.0
        %380 = vmatprep.subr.mxu0 0.0
        %381 = vmatpush1.msra.mxu0 0.0
        %382 = vmatprep.subr.mxu0 0.0
        %383 = vmatpush1.msra.mxu0 0.0
        %384 = vmatprep.subr.mxu0 0.0
        %385 = vmatpush1.msra.mxu0 0.0
        %386 = vmatprep.subr.mxu0 0.0
        %387 = vmatpush1.msra.mxu0 0.0
        %388 = vmatprep.subr.mxu0 0.0
        %389 = vmatpush1.msra.mxu0 0.0
        %390 = vmatprep.subr.mxu0 0.0
        %391 = vmatpush1.msra.mxu0 0.0
        %392 = vmatprep.subr.mxu0 0.0
        %393 = vmatpush1.msra.mxu0 0.0
        %394 = vmatprep.subr.mxu0 0.0
        %395 = vmatpush1.msra.mxu0 0.0
        %396 = vmatprep.subr.mxu0 0.0
        %397 = vmatpush1.msra.mxu0 0.0
        %398 = vmatprep.mubr.f32.mxu0 0.0
        %399 = vmatmul.mubr.f32.gmra.mrb[0].mxu0 %v332
        %v400 = vpop.f32.mrb[0].mxu0
        %v401 = vadd.f32 %v328, %v400
        %v402 = vpop.f32.mrb[0].mxu0
        %403 = vdwg.mxu0
        %vm404 = vcmp.ge.f32.partialorder %v401, 0.0
        %v405 = vstv %s315
        %v406 = vmul.f32 %v405, %v401
        %v407 = vsel %vm404, %v401, %v406
        %v408 = vld [vmem:[%s3] sm:$0xff]
        %v409 = vld [vmem:[%s3 + $0x8] sm:$0xff]
        %v410 = vld [vmem:[%s3 + $0x10] sm:$0xff]
        %v411 = vld [vmem:[%s3 + $0x18] sm:$0xff]
        %v412 = vld [vmem:[%s3 + $0x20] sm:$0xff]
        %v413 = vld [vmem:[%s3 + $0x28] sm:$0xff]
        %v414 = vld [vmem:[%s3 + $0x30] sm:$0xff]
        %v415 = vld [vmem:[%s3 + $0x38] sm:$0xff]
        %v416 = vld [vmem:[%s4] sm:$0x1]
        %v418 = vlaneseq
        %v419 = vshrl.u32 %v418, 7
        %v420 = vsub.s32 0, %v419
        %v421 = vrot.slane %v416, %v420
        %vm423 = vcmask 523264
        %v425 = vsel %vm423, %v407, 0
        %427 = vmatprep.subr.mxu0 0.0
        %428 = vmatpush1.msra.mxu0 %v408
        %429 = vmatprep.subr.mxu0 0.0
        %430 = vmatpush1.msra.mxu0 %v409
        %431 = vmatprep.subr.mxu0 0.0
        %432 = vmatpush1.msra.mxu0 %v410
        %433 = vmatprep.subr.mxu0 0.0
        %434 = vmatpush1.msra.mxu0 %v411
        %435 = vmatprep.subr.mxu0 0.0
        %436 = vmatpush1.msra.mxu0 %v412
        %437 = vmatprep.subr.mxu0 0.0
        %438 = vmatpush1.msra.mxu0 %v413
        %439 = vmatprep.subr.mxu0 0.0
        %440 = vmatpush1.msra.mxu0 %v414
        %441 = vmatprep.subr.mxu0 0.0
        %442 = vmatpush1.msra.mxu0 %v415
        %443 = vmatprep.subr.mxu0 0.0
        %444 = vmatpush1.msra.mxu0 0.0
        %445 = vmatprep.subr.mxu0 0.0
        %446 = vmatpush1.msra.mxu0 0.0
        %447 = vmatprep.subr.mxu0 0.0
        %448 = vmatpush1.msra.mxu0 0.0
        %449 = vmatprep.subr.mxu0 0.0
        %450 = vmatpush1.msra.mxu0 0.0
        %451 = vmatprep.subr.mxu0 0.0
        %452 = vmatpush1.msra.mxu0 0.0
        %453 = vmatprep.subr.mxu0 0.0
        %454 = vmatpush1.msra.mxu0 0.0
        %455 = vmatprep.subr.mxu0 0.0
        %456 = vmatpush1.msra.mxu0 0.0
        %457 = vmatprep.subr.mxu0 0.0
        %458 = vmatpush1.msra.mxu0 0.0
        %459 = vmatprep.subr.mxu0 0.0
        %460 = vmatpush1.msra.mxu0 0.0
        %461 = vmatprep.subr.mxu0 0.0
        %462 = vmatpush1.msra.mxu0 0.0
        %463 = vmatprep.subr.mxu0 0.0
        %464 = vmatpush1.msra.mxu0 0.0
        %465 = vmatprep.subr.mxu0 0.0
        %466 = vmatpush1.msra.mxu0 0.0
        %467 = vmatprep.subr.mxu0 0.0
        %468 = vmatpush1.msra.mxu0 0.0
        %469 = vmatprep.subr.mxu0 0.0
        %470 = vmatpush1.msra.mxu0 0.0
        %471 = vmatprep.subr.mxu0 0.0
        %472 = vmatpush1.msra.mxu0 0.0
        %473 = vmatprep.subr.mxu0 0.0
        %474 = vmatpush1.msra.mxu0 0.0
        %475 = vmatprep.subr.mxu0 0.0
        %476 = vmatpush1.msra.mxu0 0.0
        %477 = vmatprep.subr.mxu0 0.0
        %478 = vmatpush1.msra.mxu0 0.0
        %479 = vmatprep.subr.mxu0 0.0
        %480 = vmatpush1.msra.mxu0 0.0
        %481 = vmatprep.subr.mxu0 0.0
        %482 = vmatpush1.msra.mxu0 0.0
        %483 = vmatprep.subr.mxu0 0.0
        %484 = vmatpush1.msra.mxu0 0.0
        %485 = vmatprep.subr.mxu0 0.0
        %486 = vmatpush1.msra.mxu0 0.0
        %487 = vmatprep.subr.mxu0 0.0
        %488 = vmatpush1.msra.mxu0 0.0
        %489 = vmatprep.subr.mxu0 0.0
        %490 = vmatpush1.msra.mxu0 0.0
        %491 = vmatprep.mubr.f32.mxu0 0.0
        %492 = vmatmul.mubr.f32.gmra.mrb[0].mxu0 %v425
        %v493 = vpop.f32.mrb[0].mxu0
        %v494 = vadd.f32 %v421, %v493
        %v495 = vpop.f32.mrb[0].mxu0
        %496 = vdwg.mxu0
        %v497 = vadd.f32 %v494, %v318
        %vm498 = vcmp.ge.f32.partialorder %v497, 0.0
        %v499 = vstv %s316
        %v500 = vmul.f32 %v499, %v497
        %v501 = vsel %vm498, %v497, %v500
        %v502 = vld [vmem:[%s5] sm:$0xff]
        %v503 = vld [vmem:[%s5 + $0x8] sm:$0xff]
        %v504 = vld [vmem:[%s5 + $0x10] sm:$0xff]
        %v505 = vld [vmem:[%s5 + $0x18] sm:$0xff]
        %v506 = vld [vmem:[%s6] sm:$0x1]
        %v508 = vlaneseq
        %v509 = vshrl.u32 %v508, 7
        %v510 = vsub.s32 0, %v509
        %v511 = vrot.slane %v506, %v510
        %v514 = vsel %vm330, %v501, 0
        %516 = vmatprep.subr.mxu0 0.0
        %517 = vmatpush1.msra.mxu0 %v502
        %518 = vmatprep.subr.mxu0 0.0
        %519 = vmatpush1.msra.mxu0 %v503
        %520 = vmatprep.subr.mxu0 0.0
        %521 = vmatpush1.msra.mxu0 %v504
        %522 = vmatprep.subr.mxu0 0.0
        %523 = vmatpush1.msra.mxu0 %v505
        %524 = vmatprep.subr.mxu0 0.0
        %525 = vmatpush1.msra.mxu0 0.0
        %526 = vmatprep.subr.mxu0 0.0
        %527 = vmatpush1.msra.mxu0 0.0
        %528 = vmatprep.subr.mxu0 0.0
        %529 = vmatpush1.msra.mxu0 0.0
        %530 = vmatprep.subr.mxu0 0.0
        %531 = vmatpush1.msra.mxu0 0.0
        %532 = vmatprep.subr.mxu0 0.0
        %533 = vmatpush1.msra.mxu0 0.0
        %534 = vmatprep.subr.mxu0 0.0
        %535 = vmatpush1.msra.mxu0 0.0
        %536 = vmatprep.subr.mxu0 0.0
        %537 = vmatpush1.msra.mxu0 0.0
        %538 = vmatprep.subr.mxu0 0.0
        %539 = vmatpush1.msra.mxu0 0.0
        %540 = vmatprep.subr.mxu0 0.0
        %541 = vmatpush1.msra.mxu0 0.0
        %542 = vmatprep.subr.mxu0 0.0
        %543 = vmatpush1.msra.mxu0 0.0
        %544 = vmatprep.subr.mxu0 0.0
        %545 = vmatpush1.msra.mxu0 0.0
        %546 = vmatprep.subr.mxu0 0.0
        %547 = vmatpush1.msra.mxu0 0.0
        %548 = vmatprep.subr.mxu0 0.0
        %549 = vmatpush1.msra.mxu0 0.0
        %550 = vmatprep.subr.mxu0 0.0
        %551 = vmatpush1.msra.mxu0 0.0
        %552 = vmatprep.subr.mxu0 0.0
        %553 = vmatpush1.msra.mxu0 0.0
        %554 = vmatprep.subr.mxu0 0.0
        %555 = vmatpush1.msra.mxu0 0.0
        %556 = vmatprep.subr.mxu0 0.0
        %557 = vmatpush1.msra.mxu0 0.0
        %558 = vmatprep.subr.mxu0 0.0
        %559 = vmatpush1.msra.mxu0 0.0
        %560 = vmatprep.subr.mxu0 0.0
        %561 = vmatpush1.msra.mxu0 0.0
        %562 = vmatprep.subr.mxu0 0.0
        %563 = vmatpush1.msra.mxu0 0.0
        %564 = vmatprep.subr.mxu0 0.0
        %565 = vmatpush1.msra.mxu0 0.0
        %566 = vmatprep.subr.mxu0 0.0
        %567 = vmatpush1.msra.mxu0 0.0
        %568 = vmatprep.subr.mxu0 0.0
        %569 = vmatpush1.msra.mxu0 0.0
        %570 = vmatprep.subr.mxu0 0.0
        %571 = vmatpush1.msra.mxu0 0.0
        %572 = vmatprep.subr.mxu0 0.0
        %573 = vmatpush1.msra.mxu0 0.0
        %574 = vmatprep.subr.mxu0 0.0
        %575 = vmatpush1.msra.mxu0 0.0
        %576 = vmatprep.subr.mxu0 0.0
        %577 = vmatpush1.msra.mxu0 0.0
        %578 = vmatprep.subr.mxu0 0.0
        %579 = vmatpush1.msra.mxu0 0.0
        %580 = vmatprep.mubr.f32.mxu0 0.0
        %581 = vmatmul.mubr.f32.gmra.mrb[0].mxu0 %v514
        %v582 = vpop.f32.mrb[0].mxu0
        %v583 = vadd.f32 %v511, %v582
        %v584 = vpop.f32.mrb[0].mxu0
        %585 = vdwg.mxu0
        %vm586 = vcmp.ge.f32.partialorder %v583, 0.0
        %v587 = vstv %s317
        %v588 = vmul.f32 %v587, %v583
        %v589 = vsel %vm586, %v583, %v588
        %590 = vst [vmem:[%s310] sm:$0xff] %v589
        %s591 = sand.u32 %s204, 1
        %s592 = scalar_lea.sflag [#allocation3], %s591
        %s593 = sand.u32 %s204, 1
        %s594 = smul.addr %s593, 8
        %s595 = scalar_lea.vmem [#allocation5], %s594
        // Predicated region
        $region57: #{tpu_custom_call.1} parent=51 // pred_check
          %p596 = pneg %p214
        $region58: #{tpu_custom_call.1} parent=51 // pred_check_branch
          %598 = sbr.rel (%p596) target = $region60
        $region59: #{tpu_custom_call.1} parent=51 // pred_region
          %s600 = ssub.s32 128, 128
          %601 = vsyncadd %s592, %s600
          %s602 = smul.addr %s23, 128
          %s603 = scalar_lea.hbm %s8, %s602
          %s605 = sshll.u32 %s595, 4
          %s606 = int_to_ptr.vmem [resolvable:$true] %s605
          %608 = dma.vmem_to_hbm [thread:$0]  %s606, 128, %s603, %s592
        $region60: #{tpu_custom_call.1} parent=51 // pred_fallthru
          _
      $region52: #{tpu_custom_call.1} parent=5 // pred_fallthru
        _
      %p609 = scmp.le.s32.totalorder 2, %s18
      // Predicated region
      $region61: #{tpu_custom_call.1} parent=5 // pred_check
        %p610 = pneg %p609
      $region62: #{tpu_custom_call.1} parent=5 // pred_check_branch
        %612 = sbr.rel (%p610) target = $region64
      $region63: #{tpu_custom_call.1} parent=5 // pred_region
        %s613 = ssub.s32 %s18, 2
        // Predicated region
        $region65: #{tpu_custom_call.1} parent=63 // pred_check
          %p614 = pneg %p220
        $region66: #{tpu_custom_call.1} parent=63 // pred_check_branch
          %616 = sbr.rel (%p614) target = $region68
        $region67: #{tpu_custom_call.1} parent=63 // pred_region
          %s617 = sand.u32 %s205, 1
          %s618 = scalar_lea.sflag [#allocation3], %s617
          %s619 = sand.u32 %s205, 1
          %s620 = smul.addr %s619, 8
          %s621 = scalar_lea.vmem [#allocation5], %s620
          %622 = dma.done %s618, 128
        $region68: #{tpu_custom_call.1} parent=63 // pred_fallthru
          _
      $region64: #{tpu_custom_call.1} parent=5 // pred_fallthru
        _
    $region6: #{tpu_custom_call.1} parent=1 // loop_footer
      %s22 = sadd.s32 1, %s18
    $region7: #{tpu_custom_call.1} parent=1 // loop_footer_branch
      %17 = sbr.rel target = $region3
    $region8: #{tpu_custom_call.1} parent=1 // loop_exit
      _
    %623 = vsyncpa [#allocation3], 1
    %s624 = scalar_lea.sflag [#allocation3], 1
    %625 = vsyncpa %s624, 1
    %626 = vsyncpa [#allocation4], 1
    %s627 = scalar_lea.sflag [#allocation4], 1
    %628 = vsyncpa %s627, 1

</llo_original>
